<compile_context>
chip_gen: v6e
topology: v6e:2x2x1
jax: 0.10.0
libtpu: 0.0.40
codegen_flags: <defaults>
</compile_context>

<pallas_src>
import functools

import jax
import jax.numpy as jnp
import numpy as np
from jax import lax
from jax.experimental import pallas as pl
from jax.experimental.pallas import tpu as pltpu


# 3x3 taps in PyTorch cross-correlation order: tap index = (dh + 1) * 3 + (dw + 1).
_TAPS = ((-1, -1), (-1, 0), (-1, 1),
         (0, -1), (0, 0), (0, 1),
         (1, -1), (1, 0), (1, 1))

_MXU_MIN_MID = 16   # below this the 1x1 convs run as VPU broadcast-FMAs


def shuffle_unit_kernel(w13_ref, cp_ref, mask_ref, x_ref, o_ref, *, mid, W):
    """One batch block of the stride-1 ShuffleUnit forward.

    w13_ref : (2*mid, mid)  rows [:mid] = conv1 (BN1 folded), [mid:] = conv3 (BN3 folded)
    cp_ref  : (mid, 12)     cols 0..8 = depthwise 3x3 taps (BN2 folded),
                            col 9 = b1, col 10 = b2, col 11 = b3
    mask_ref: (8, L)        {0,1} edge masks for the 8 non-center taps
    x_ref   : (2*mid, L)    input slab, L = B_blk*H*W lanes (lane-dense)
    o_ref   : (2*mid, L)    output slab in concat order [x1; u]; the wrapper's
                            single output transpose realizes the groups=2 shuffle.
    """
    L = x_ref.shape[-1]
    x = x_ref[...]                                   # (2*mid, L) f32
    x1 = x[:mid, :]                                  # branch1 = identity
    x2 = x[mid:, :]                                  # branch2 input

    w13 = w13_ref[...]                               # (2*mid, mid)
    cp = cp_ref[...]                                 # (mid, 12)
    b1 = cp[:, 9:10]
    b2 = cp[:, 10:11]
    b3 = cp[:, 11:12]

    def conv1x1(w, xin, b):
        if mid >= _MXU_MIN_MID:
            # MXU path: bf16 operands, f32 accumulation.
            # TODO(synk): pad mid to a multiple of 8 (ideally 128/256) when it is
            # not already aligned, for full systolic-array utilization.
            acc = jnp.dot(w.astype(jnp.bfloat16), xin.astype(jnp.bfloat16),
                          preferred_element_type=jnp.float32)
            return acc + b
        # VPU path for tiny mid: `mid` broadcast-FMAs -- a (2,2)x(2,L) matmul
        # would leave the MXU almost empty and only pay fill/drain latency.
        acc = jnp.broadcast_to(b, (mid, L))
        for j in range(mid):
            acc = acc + w[:, j:j + 1] * xin[j:j + 1, :]
        return acc

    # ---- 1x1 conv (+ folded BN1) + ReLU ----
    t = jnp.maximum(conv1x1(w13[:mid, :], x2, b1), 0.0)

    # ---- depthwise 3x3, pad=1, stride=1 (+ folded BN2) ----
    # Each tap is a lane rotation of t (XLU slot, essentially free next to the
    # VPU FMAs) times a per-channel weight, with a precomputed per-lane {0,1}
    # mask zeroing contributions that would cross an image row/column border
    # (or leak into the neighbouring image inside the slab).
    y = jnp.broadcast_to(b2, (mid, L))
    mrow = 0
    for tap, (dh, dw) in enumerate(_TAPS):
        wt = cp[:, tap:tap + 1]                      # (mid, 1)
        off = dh * W + dw
        if off == 0:                                 # center tap: no shift, no mask
            sh = t
        else:
            sh = pltpu.roll(t, (-off) % L, axis=1)   # out[l] = t[(l+off) mod L]
            sh = sh * mask_ref[mrow:mrow + 1, :]     # (1, L) edge mask
            mrow += 1
        y = y + wt * sh

    # ---- 1x1 conv (+ folded BN3) + ReLU ----
    u = jnp.maximum(conv1x1(w13[mid:, :], y, b3), 0.0)

    # ---- single dense full-block store (concat order [x1; u]) ----
    o_ref[...] = jnp.concatenate([x1, u], axis=0)


def _pick_batch_block(N, C, HW, *, bytes_per_elem=4, vmem_budget_bytes=8 << 20):
    """Largest per-step batch block such that:
       - the block lane extent is 128-aligned (unmasked lane-dense loads/stores)
         unless the block covers the full array,
       - double-buffered in+out blocks stay within a conservative VMEM budget
         (safe on v7x's 64 MiB as well as v5e/v6e's 128 MiB),
       - when N >= 2, at least two grid steps remain (a 2-TC chip can split them).
    """
    def lane_ok(b):
        return (b * HW) % 128 == 0 or b == N

    def vmem_ok(b):
        blk_bytes = C * b * HW * bytes_per_elem
        return 2 * 2 * blk_bytes <= vmem_budget_bytes   # in+out, double-buffered

    candidates = [b for b in range(1, N + 1) if N % b == 0 and lane_ok(b)]
    good = [b for b in candidates if vmem_ok(b)]
    multi = [b for b in good if N // b >= 2]
    if multi:
        return max(multi)
    if good:
        return max(good)
    return N   # full-array block is always spec-legal


@functools.partial(jax.jit, static_argnames=("stride", "eps"))
def shuffle_unit_forward(x, params, *, stride=1, eps=1e-5):
    """x: (N, C, H, W) float32, stride-1 ShuffleUnit forward -> (N, C, H, W)."""
    if stride != 1:
        # TODO(synk): stride=2 downsampling branch pair not implemented.
        raise NotImplementedError("Only the stride=1 ShuffleUnit is implemented.")
    N, C, H, W = x.shape
    assert C % 2 == 0
    mid = C // 2
    HW = H * W

    (w1, g1, be1, m1, v1,
     wdw, g2, be2, m2, v2,
     w3, g3, be3, m3, v3) = params

    # --- fold eval-mode BatchNorm into the bias-free convs (parameter math) ---
    s1 = g1 / jnp.sqrt(v1 + eps)
    w1f = (w1[:, :, 0, 0] * s1[:, None]).astype(jnp.float32)        # (mid, mid)
    b1f = (be1 - m1 * s1)[:, None].astype(jnp.float32)              # (mid, 1)

    s2 = g2 / jnp.sqrt(v2 + eps)
    dwf = (wdw[:, 0] * s2[:, None, None]).reshape(mid, 9)           # (mid, 9)
    dwf = dwf.astype(jnp.float32)
    b2f = (be2 - m2 * s2)[:, None].astype(jnp.float32)

    s3 = g3 / jnp.sqrt(v3 + eps)
    w3f = (w3[:, :, 0, 0] * s3[:, None]).astype(jnp.float32)
    b3f = (be3 - m3 * s3)[:, None].astype(jnp.float32)

    # Packed resident parameter blocks (fewer tiny DMAs / padded VMEM tiles).
    w13 = jnp.concatenate([w1f, w3f], axis=0)                       # (2*mid, mid)
    cp = jnp.concatenate([dwf, b1f, b2f, b3f], axis=1)              # (mid, 12)

    # --- batch blocking ---
    B_blk = _pick_batch_block(N, C, HW)
    L_blk = B_blk * HW
    n_steps = N // B_blk

    # --- precomputed {0,1} edge masks for the 8 non-center depthwise taps ---
    lane = np.arange(L_blk)
    pos = lane % HW
    row = pos // W
    col = pos % W
    mask_rows = []
    for (dh, dw) in _TAPS:
        if (dh, dw) == (0, 0):
            continue
        ok = np.ones(L_blk, np.float32)
        if dh == -1:
            ok = ok * (row >= 1)
        elif dh == 1:
            ok = ok * (row <= H - 2)
        if dw == -1:
            ok = ok * (col >= 1)
        elif dw == 1:
            ok = ok * (col <= W - 2)
        mask_rows.append(ok.astype(np.float32))
    masks = jnp.asarray(np.stack(mask_rows))                        # (8, L_blk)

    # Lane-dense slab layout (one cheap XLA transpose): channels on sublanes,
    # batch*spatial flattened on lanes.
    x_slab = (x.astype(jnp.float32)
               .reshape(N, C, HW)
               .transpose(1, 0, 2)
               .reshape(C, N * HW))

    kernel = functools.partial(shuffle_unit_kernel, mid=mid, W=W)

    out = pl.pallas_call(
        kernel,
        out_shape=jax.ShapeDtypeStruct((C, N * HW), jnp.float32),
        grid=(n_steps,),
        in_specs=[
            pl.BlockSpec((2 * mid, mid), lambda i: (0, 0)),   # w13 (resident)
            pl.BlockSpec((mid, 12), lambda i: (0, 0)),        # packed chan params
            pl.BlockSpec((8, L_blk), lambda i: (0, 0)),       # dw edge masks
            pl.BlockSpec((C, L_blk), lambda i: (0, i)),       # x slab block
        ],
        out_specs=pl.BlockSpec((C, L_blk), lambda i: (0, i)),
        compiler_params=pltpu.CompilerParams(
            # Each step writes a disjoint output block -> "parallel".
            # TODO(synk): on v7x, pltpu.CORE_PARALLEL / an explicit core_map is
            # the documented way to actually split this axis across the 2 TCs.
            dimension_semantics=("parallel",)),
    )(w13, cp, masks, x_slab)

    # Kernel rows are in concat order [x1_0..x1_{m-1}, u_0..u_{m-1}]; the single
    # transpose below interleaves them -> groups=2 channel shuffle for free.
    return (out.reshape(2, mid, N, HW)
               .transpose(2, 1, 0, 3)
               .reshape(N, C, H, W))


def reference_forward(x, params, *, eps=1e-5):
    """Pure-JAX reference matching the PyTorch ShuffleUnit (stride=1, eval BN)."""
    (w1, g1, be1, m1, v1,
     wdw, g2, be2, m2, v2,
     w3, g3, be3, m3, v3) = params
    N, C, H, W = x.shape
    mid = C // 2

    def bn(y, g, b, m, v):
        s = g / jnp.sqrt(v + eps)
        return y * s[None, :, None, None] + (b - m * s)[None, :, None, None]

    dn = ("NCHW", "OIHW", "NCHW")
    hp = jax.lax.Precision.HIGHEST
    x1, x2 = x[:, :mid], x[:, mid:]
    t = lax.conv_general_dilated(x2, w1, (1, 1), "VALID",
                                 dimension_numbers=dn, precision=hp)
    t = jax.nn.relu(bn(t, g1, be1, m1, v1))
    t = lax.conv_general_dilated(t, wdw, (1, 1), [(1, 1), (1, 1)],
                                 dimension_numbers=dn,
                                 feature_group_count=mid, precision=hp)
    t = bn(t, g2, be2, m2, v2)
    t = lax.conv_general_dilated(t, w3, (1, 1), "VALID",
                                 dimension_numbers=dn, precision=hp)
    t = jax.nn.relu(bn(t, g3, be3, m3, v3))
    out = jnp.concatenate([x1, t], axis=1)
    out = (out.reshape(N, 2, C // 2, H, W)
              .transpose(0, 2, 1, 3, 4)
              .reshape(N, C, H, W))
    return out


if __name__ == "__main__":
    # in_channels == out_channels == 4, stride == 1 (basic ShuffleUnit)
    N, C, H, W = 2, 4, 16, 16
    mid = C // 2

    key = jax.random.PRNGKey(0)
    keys = jax.random.split(key, 16)
    x = jax.random.normal(keys[0], (N, C, H, W), dtype=jnp.float32)

    def conv_init(k, shape, fan_in):
        bound = 1.0 / np.sqrt(fan_in)
        return jax.random.uniform(k, shape, jnp.float32, -bound, bound)

    w1 = conv_init(keys[1], (mid, mid, 1, 1), mid)      # 1x1 conv
    wdw = conv_init(keys[2], (mid, 1, 3, 3), 9)         # depthwise 3x3
    w3 = conv_init(keys[3], (mid, mid, 1, 1), mid)      # 1x1 conv

    def bn_init(kg, kb, km, kv, n):
        g = jax.random.uniform(kg, (n,), jnp.float32, 0.5, 1.5)
        b = 0.1 * jax.random.normal(kb, (n,), dtype=jnp.float32)
        m = 0.1 * jax.random.normal(km, (n,), dtype=jnp.float32)
        v = jax.random.uniform(kv, (n,), jnp.float32, 0.5, 1.5)
        return g, b, m, v

    g1, be1, m1, v1 = bn_init(keys[4], keys[5], keys[6], keys[7], mid)
    g2, be2, m2, v2 = bn_init(keys[8], keys[9], keys[10], keys[11], mid)
    g3, be3, m3, v3 = bn_init(keys[12], keys[13], keys[14], keys[15], mid)

    params = (w1, g1, be1, m1, v1,
              wdw, g2, be2, m2, v2,
              w3, g3, be3, m3, v3)

    out = jax.block_until_ready(shuffle_unit_forward(x, params))
    ref = jax.block_until_ready(reference_forward(x, params))

    assert out.shape == (N, C, H, W)
    # All kernel math is f32 (VPU path for mid=2), so a tight tolerance holds.
    np.testing.assert_allclose(np.asarray(out), np.asarray(ref),
                               rtol=1e-4, atol=1e-4)
    print("KERNEL_OK")
</pallas_src>

<mosaic_0001>
module attributes {stable_mosaic.version = 11 : i64} {
  func.func @shuffle_unit_kernel(%arg0: i32, %arg1: memref<4x2xf32, #tpu.memory_space<vmem>>, %arg2: memref<2x12xf32, #tpu.memory_space<vmem>>, %arg3: memref<8x256xf32, #tpu.memory_space<vmem>>, %arg4: memref<4x256xf32, #tpu.memory_space<vmem>>, %arg5: memref<4x256xf32, #tpu.memory_space<vmem>>) attributes {dimension_semantics = [#tpu.dimension_semantics<parallel>], iteration_bounds = array<i64: 2>, scalar_prefetch = 0 : i64, scratch_operands = 0 : i64, tpu.core_type = #tpu.core_type<tc>, window_params = [{pipeline_mode = #tpu.pipeline_mode<synchronous>, transform_indices = @transform_0, window_bounds = array<i64: 4, 2>}, {pipeline_mode = #tpu.pipeline_mode<synchronous>, transform_indices = @transform_1, window_bounds = array<i64: 2, 12>}, {pipeline_mode = #tpu.pipeline_mode<synchronous>, transform_indices = @transform_2, window_bounds = array<i64: 8, 256>}, {transform_indices = @transform_3, window_bounds = array<i64: 4, 256>}, {transform_indices = @transform_4, window_bounds = array<i64: 4, 256>}]} {
    %c0 = arith.constant 0 : index
    %c0_0 = arith.constant 0 : index
    %0 = vector.load %arg4[%c0, %c0_0] : memref<4x256xf32, #tpu.memory_space<vmem>>, vector<4x256xf32>
    %1 = vector.extract_strided_slice %0 {offsets = [0, 0], sizes = [2, 256], strides = [1, 1]} : vector<4x256xf32> to vector<2x256xf32>
    %2 = vector.extract_strided_slice %0 {offsets = [2, 0], sizes = [2, 256], strides = [1, 1]} : vector<4x256xf32> to vector<2x256xf32>
    %c0_1 = arith.constant 0 : index
    %c0_2 = arith.constant 0 : index
    %3 = vector.load %arg1[%c0_1, %c0_2] : memref<4x2xf32, #tpu.memory_space<vmem>>, vector<4x2xf32>
    %c0_3 = arith.constant 0 : index
    %c0_4 = arith.constant 0 : index
    %4 = vector.load %arg2[%c0_3, %c0_4] : memref<2x12xf32, #tpu.memory_space<vmem>>, vector<2x12xf32>
    %5 = vector.extract_strided_slice %4 {offsets = [0, 9], sizes = [2, 1], strides = [1, 1]} : vector<2x12xf32> to vector<2x1xf32>
    %6 = vector.extract_strided_slice %4 {offsets = [0, 10], sizes = [2, 1], strides = [1, 1]} : vector<2x12xf32> to vector<2x1xf32>
    %7 = vector.extract_strided_slice %4 {offsets = [0, 11], sizes = [2, 1], strides = [1, 1]} : vector<2x12xf32> to vector<2x1xf32>
    %8 = vector.extract_strided_slice %3 {offsets = [0, 0], sizes = [2, 2], strides = [1, 1]} : vector<4x2xf32> to vector<2x2xf32>
    %9 = vector.shape_cast %5 : vector<2x1xf32> to vector<2x1xf32>
    %10 = vector.broadcast %9 : vector<2x1xf32> to vector<2x256xf32>
    %11 = vector.extract_strided_slice %8 {offsets = [0, 0], sizes = [2, 1], strides = [1, 1]} : vector<2x2xf32> to vector<2x1xf32>
    %12 = vector.extract_strided_slice %2 {offsets = [0, 0], sizes = [1, 256], strides = [1, 1]} : vector<2x256xf32> to vector<1x256xf32>
    %13 = vector.broadcast %11 : vector<2x1xf32> to vector<2x256xf32>
    %14 = vector.broadcast %12 : vector<1x256xf32> to vector<2x256xf32>
    %15 = arith.mulf %13, %14 : vector<2x256xf32>
    %16 = arith.addf %10, %15 : vector<2x256xf32>
    %17 = vector.extract_strided_slice %8 {offsets = [0, 1], sizes = [2, 1], strides = [1, 1]} : vector<2x2xf32> to vector<2x1xf32>
    %18 = vector.extract_strided_slice %2 {offsets = [1, 0], sizes = [1, 256], strides = [1, 1]} : vector<2x256xf32> to vector<1x256xf32>
    %19 = vector.broadcast %17 : vector<2x1xf32> to vector<2x256xf32>
    %20 = vector.broadcast %18 : vector<1x256xf32> to vector<2x256xf32>
    %21 = arith.mulf %19, %20 : vector<2x256xf32>
    %22 = arith.addf %16, %21 : vector<2x256xf32>
    %cst = arith.constant 0.000000e+00 : f32
    %23 = vector.broadcast %cst : f32 to vector<2x256xf32>
    %24 = arith.maximumf %22, %23 : vector<2x256xf32>
    %25 = vector.shape_cast %6 : vector<2x1xf32> to vector<2x1xf32>
    %26 = vector.broadcast %25 : vector<2x1xf32> to vector<2x256xf32>
    %27 = vector.extract_strided_slice %4 {offsets = [0, 0], sizes = [2, 1], strides = [1, 1]} : vector<2x12xf32> to vector<2x1xf32>
    %c17_i32 = arith.constant 17 : i32
    %28 = tpu.dynamic_rotate %24 by %c17_i32 dim 1 : vector<2x256xf32>, i32 -> vector<2x256xf32>
    %c0_5 = arith.constant 0 : index
    %c0_6 = arith.constant 0 : index
    %29 = vector.load %arg3[%c0_5, %c0_6] : memref<8x256xf32, #tpu.memory_space<vmem>>, vector<1x256xf32>
    %30 = vector.broadcast %29 : vector<1x256xf32> to vector<2x256xf32>
    %31 = arith.mulf %28, %30 : vector<2x256xf32>
    %32 = vector.broadcast %27 : vector<2x1xf32> to vector<2x256xf32>
    %33 = arith.mulf %32, %31 : vector<2x256xf32>
    %34 = arith.addf %26, %33 : vector<2x256xf32>
    %35 = vector.extract_strided_slice %4 {offsets = [0, 1], sizes = [2, 1], strides = [1, 1]} : vector<2x12xf32> to vector<2x1xf32>
    %c16_i32 = arith.constant 16 : i32
    %36 = tpu.dynamic_rotate %24 by %c16_i32 dim 1 : vector<2x256xf32>, i32 -> vector<2x256xf32>
    %c1 = arith.constant 1 : index
    %c0_7 = arith.constant 0 : index
    %37 = vector.load %arg3[%c1, %c0_7] : memref<8x256xf32, #tpu.memory_space<vmem>>, vector<1x256xf32>
    %38 = vector.broadcast %37 : vector<1x256xf32> to vector<2x256xf32>
    %39 = arith.mulf %36, %38 : vector<2x256xf32>
    %40 = vector.broadcast %35 : vector<2x1xf32> to vector<2x256xf32>
    %41 = arith.mulf %40, %39 : vector<2x256xf32>
    %42 = arith.addf %34, %41 : vector<2x256xf32>
    %43 = vector.extract_strided_slice %4 {offsets = [0, 2], sizes = [2, 1], strides = [1, 1]} : vector<2x12xf32> to vector<2x1xf32>
    %c15_i32 = arith.constant 15 : i32
    %44 = tpu.dynamic_rotate %24 by %c15_i32 dim 1 : vector<2x256xf32>, i32 -> vector<2x256xf32>
    %c2 = arith.constant 2 : index
    %c0_8 = arith.constant 0 : index
    %45 = vector.load %arg3[%c2, %c0_8] : memref<8x256xf32, #tpu.memory_space<vmem>>, vector<1x256xf32>
    %46 = vector.broadcast %45 : vector<1x256xf32> to vector<2x256xf32>
    %47 = arith.mulf %44, %46 : vector<2x256xf32>
    %48 = vector.broadcast %43 : vector<2x1xf32> to vector<2x256xf32>
    %49 = arith.mulf %48, %47 : vector<2x256xf32>
    %50 = arith.addf %42, %49 : vector<2x256xf32>
    %51 = vector.extract_strided_slice %4 {offsets = [0, 3], sizes = [2, 1], strides = [1, 1]} : vector<2x12xf32> to vector<2x1xf32>
    %c1_i32 = arith.constant 1 : i32
    %52 = tpu.dynamic_rotate %24 by %c1_i32 dim 1 : vector<2x256xf32>, i32 -> vector<2x256xf32>
    %c3 = arith.constant 3 : index
    %c0_9 = arith.constant 0 : index
    %53 = vector.load %arg3[%c3, %c0_9] : memref<8x256xf32, #tpu.memory_space<vmem>>, vector<1x256xf32>
    %54 = vector.broadcast %53 : vector<1x256xf32> to vector<2x256xf32>
    %55 = arith.mulf %52, %54 : vector<2x256xf32>
    %56 = vector.broadcast %51 : vector<2x1xf32> to vector<2x256xf32>
    %57 = arith.mulf %56, %55 : vector<2x256xf32>
    %58 = arith.addf %50, %57 : vector<2x256xf32>
    %59 = vector.extract_strided_slice %4 {offsets = [0, 4], sizes = [2, 1], strides = [1, 1]} : vector<2x12xf32> to vector<2x1xf32>
    %60 = vector.broadcast %59 : vector<2x1xf32> to vector<2x256xf32>
    %61 = arith.mulf %60, %24 : vector<2x256xf32>
    %62 = arith.addf %58, %61 : vector<2x256xf32>
    %63 = vector.extract_strided_slice %4 {offsets = [0, 5], sizes = [2, 1], strides = [1, 1]} : vector<2x12xf32> to vector<2x1xf32>
    %c255_i32 = arith.constant 255 : i32
    %64 = tpu.dynamic_rotate %24 by %c255_i32 dim 1 : vector<2x256xf32>, i32 -> vector<2x256xf32>
    %c4 = arith.constant 4 : index
    %c0_10 = arith.constant 0 : index
    %65 = vector.load %arg3[%c4, %c0_10] : memref<8x256xf32, #tpu.memory_space<vmem>>, vector<1x256xf32>
    %66 = vector.broadcast %65 : vector<1x256xf32> to vector<2x256xf32>
    %67 = arith.mulf %64, %66 : vector<2x256xf32>
    %68 = vector.broadcast %63 : vector<2x1xf32> to vector<2x256xf32>
    %69 = arith.mulf %68, %67 : vector<2x256xf32>
    %70 = arith.addf %62, %69 : vector<2x256xf32>
    %71 = vector.extract_strided_slice %4 {offsets = [0, 6], sizes = [2, 1], strides = [1, 1]} : vector<2x12xf32> to vector<2x1xf32>
    %c241_i32 = arith.constant 241 : i32
    %72 = tpu.dynamic_rotate %24 by %c241_i32 dim 1 : vector<2x256xf32>, i32 -> vector<2x256xf32>
    %c5 = arith.constant 5 : index
    %c0_11 = arith.constant 0 : index
    %73 = vector.load %arg3[%c5, %c0_11] : memref<8x256xf32, #tpu.memory_space<vmem>>, vector<1x256xf32>
    %74 = vector.broadcast %73 : vector<1x256xf32> to vector<2x256xf32>
    %75 = arith.mulf %72, %74 : vector<2x256xf32>
    %76 = vector.broadcast %71 : vector<2x1xf32> to vector<2x256xf32>
    %77 = arith.mulf %76, %75 : vector<2x256xf32>
    %78 = arith.addf %70, %77 : vector<2x256xf32>
    %79 = vector.extract_strided_slice %4 {offsets = [0, 7], sizes = [2, 1], strides = [1, 1]} : vector<2x12xf32> to vector<2x1xf32>
    %c240_i32 = arith.constant 240 : i32
    %80 = tpu.dynamic_rotate %24 by %c240_i32 dim 1 : vector<2x256xf32>, i32 -> vector<2x256xf32>
    %c6 = arith.constant 6 : index
    %c0_12 = arith.constant 0 : index
    %81 = vector.load %arg3[%c6, %c0_12] : memref<8x256xf32, #tpu.memory_space<vmem>>, vector<1x256xf32>
    %82 = vector.broadcast %81 : vector<1x256xf32> to vector<2x256xf32>
    %83 = arith.mulf %80, %82 : vector<2x256xf32>
    %84 = vector.broadcast %79 : vector<2x1xf32> to vector<2x256xf32>
    %85 = arith.mulf %84, %83 : vector<2x256xf32>
    %86 = arith.addf %78, %85 : vector<2x256xf32>
    %87 = vector.extract_strided_slice %4 {offsets = [0, 8], sizes = [2, 1], strides = [1, 1]} : vector<2x12xf32> to vector<2x1xf32>
    %c239_i32 = arith.constant 239 : i32
    %88 = tpu.dynamic_rotate %24 by %c239_i32 dim 1 : vector<2x256xf32>, i32 -> vector<2x256xf32>
    %c7 = arith.constant 7 : index
    %c0_13 = arith.constant 0 : index
    %89 = vector.load %arg3[%c7, %c0_13] : memref<8x256xf32, #tpu.memory_space<vmem>>, vector<1x256xf32>
    %90 = vector.broadcast %89 : vector<1x256xf32> to vector<2x256xf32>
    %91 = arith.mulf %88, %90 : vector<2x256xf32>
    %92 = vector.broadcast %87 : vector<2x1xf32> to vector<2x256xf32>
    %93 = arith.mulf %92, %91 : vector<2x256xf32>
    %94 = arith.addf %86, %93 : vector<2x256xf32>
    %95 = vector.extract_strided_slice %3 {offsets = [2, 0], sizes = [2, 2], strides = [1, 1]} : vector<4x2xf32> to vector<2x2xf32>
    %96 = vector.shape_cast %7 : vector<2x1xf32> to vector<2x1xf32>
    %97 = vector.broadcast %96 : vector<2x1xf32> to vector<2x256xf32>
    %98 = vector.extract_strided_slice %95 {offsets = [0, 0], sizes = [2, 1], strides = [1, 1]} : vector<2x2xf32> to vector<2x1xf32>
    %99 = vector.extract_strided_slice %94 {offsets = [0, 0], sizes = [1, 256], strides = [1, 1]} : vector<2x256xf32> to vector<1x256xf32>
    %100 = vector.broadcast %98 : vector<2x1xf32> to vector<2x256xf32>
    %101 = vector.broadcast %99 : vector<1x256xf32> to vector<2x256xf32>
    %102 = arith.mulf %100, %101 : vector<2x256xf32>
    %103 = arith.addf %97, %102 : vector<2x256xf32>
    %104 = vector.extract_strided_slice %95 {offsets = [0, 1], sizes = [2, 1], strides = [1, 1]} : vector<2x2xf32> to vector<2x1xf32>
    %105 = vector.extract_strided_slice %94 {offsets = [1, 0], sizes = [1, 256], strides = [1, 1]} : vector<2x256xf32> to vector<1x256xf32>
    %106 = vector.broadcast %104 : vector<2x1xf32> to vector<2x256xf32>
    %107 = vector.broadcast %105 : vector<1x256xf32> to vector<2x256xf32>
    %108 = arith.mulf %106, %107 : vector<2x256xf32>
    %109 = arith.addf %103, %108 : vector<2x256xf32>
    %cst_14 = arith.constant 0.000000e+00 : f32
    %110 = vector.broadcast %cst_14 : f32 to vector<2x256xf32>
    %111 = arith.maximumf %109, %110 : vector<2x256xf32>
    %112 = tpu.concatenate %1, %111 in 0 : vector<2x256xf32>, vector<2x256xf32> -> vector<4x256xf32>
    %c0_15 = arith.constant 0 : index
    %c0_16 = arith.constant 0 : index
    %113 = vector.load %arg5[%c0_15, %c0_16] : memref<4x256xf32, #tpu.memory_space<vmem>>, vector<4x256xf32>
    tpu.vector_store %arg5[%c0_15, %c0_16], %112 {strides = array<i32>} : memref<4x256xf32, #tpu.memory_space<vmem>>, vector<4x256xf32>,
    return
  }
  func.func @transform_0(%arg0: i32) -> (i32, i32) {
    %c0_i32 = arith.constant 0 : i32
    %c0_i32_0 = arith.constant 0 : i32
    %c0_i32_1 = arith.constant 0 : i32
    return %c0_i32, %c0_i32_0 : i32, i32
  }
  func.func @transform_1(%arg0: i32) -> (i32, i32) {
    %c0_i32 = arith.constant 0 : i32
    %c0_i32_0 = arith.constant 0 : i32
    %c0_i32_1 = arith.constant 0 : i32
    return %c0_i32, %c0_i32_0 : i32, i32
  }
  func.func @transform_2(%arg0: i32) -> (i32, i32) {
    %c0_i32 = arith.constant 0 : i32
    %c0_i32_0 = arith.constant 0 : i32
    %c0_i32_1 = arith.constant 0 : i32
    return %c0_i32, %c0_i32_0 : i32, i32
  }
  func.func @transform_3(%arg0: i32) -> (i32, i32) {
    %c0_i32 = arith.constant 0 : i32
    %c0_i32_0 = arith.constant 0 : i32
    return %c0_i32, %arg0 : i32, i32
  }
  func.func @transform_4(%arg0: i32) -> (i32, i32) {
    %c0_i32 = arith.constant 0 : i32
    %c0_i32_0 = arith.constant 0 : i32
    return %c0_i32, %arg0 : i32, i32
  }
}

</mosaic_0001>

<llo_original>
// kernel: shuffle_unit_forward.1
$region0: #{shuffle_unit_forward.1}
  #allocation0 [shape = 'u32[]', space=smem, size = 0x4, offset = 0x4, fixed_abs, tag = 'smem constant byte address 0x4 - core index']
  #allocation1 [shape = 'u32[144,128]{1,0:T(1,128)}', space=vmem, size = 0x12000, scoped, tag = 'internal scratch']
  %s0 = inlined_call_operand.vmem [shape: f32[4,2], index: 0, kind: input, shape index: {}]
  %s1 = inlined_call_operand.vmem [shape: f32[2,12], index: 1, kind: input, shape index: {}]
  %s2 = inlined_call_operand.vmem [shape: f32[8,256], index: 2, kind: input, shape index: {}]
  %s3 = inlined_call_operand.vmem [shape: f32[4,512], index: 3, kind: input, shape index: {}]
  %s4 = inlined_call_operand.vmem [shape: f32[4,512], index: 4, kind: output, shape index: {}]
  %s5 = sld [smem:[#allocation0]]
  $region49: #{shuffle_unit_forward.1} parent=0
    _
  %s7 = ssub.s32 1, %s5
  %s8 = scalar_select 0, %s7, %s5
  loop: start=0, step=1, limit=4
  $region2: #{shuffle_unit_forward.1} parent=0 // loop_pre_header
    _
  $region3: #{shuffle_unit_forward.1} parent=0 // loop_header
    %s10 = sphi 0, %s14
    %p11 = scmp.ge.s32.totalorder %s10, 4
    %s18 = sphi 0, %s18
    %s20 = sphi 0, %s18
    %s21 = sphi 0, %s20
    %s35 = sphi 0, %s21
    %s39 = sphi 0, %s39
    %s41 = sphi 0, %s39
    %s42 = sphi 0, %s41
    %s56 = sphi 0, %s42
    %s60 = sphi 0, %s60
    %s62 = sphi 0, %s60
    %s63 = sphi 0, %s62
    %s77 = sphi 0, %s63
    %s83 = sphi 0, %s85
    %s86 = sphi 0, %s83
    %s87 = sphi 0, %s86
    %s103 = sphi 0, %s87
    %s109 = sphi 0, %s111
    %s112 = sphi 0, %s109
    %s113 = sphi 0, %s112
    %s129 = sphi 0, %s113
  $region4: #{shuffle_unit_forward.1} parent=0 // loop_header_branch
    %13 = sbr.rel (%p11) target = $region8
  $region5: #{shuffle_unit_forward.1} parent=0 // loop_body
    %s15 = ssub.s32 %s10, 1
    %s16 = ssub.s32 %s10, 2
    %s17 = sadd.s32 %s10, 1
    %s19 = sadd.s32 %s18, 1
    %p22 = scmp.eq.s32.totalorder %s10, 1
    %p23 = scmp.ne.s32.totalorder %s18, %s20
    %p24 = scmp.eq.s32.totalorder %s10, 0
    %p25 = por %p23, %p24
    %p26 = scmp.ne.s32.totalorder %s18, %s20
    %p27 = scmp.eq.s32.totalorder %s15, 1
    %p28 = por %p26, %p27
    %p29 = scmp.ne.s32.totalorder %s20, %s21
    %p30 = scmp.eq.s32.totalorder %s15, 0
    %p31 = por %p29, %p30
    %p32 = scmp.ne.s32.totalorder %s20, %s21
    %p33 = scmp.eq.s32.totalorder %s16, 1
    %p34 = por %p32, %p33
    %p36 = scmp.ne.s32.totalorder %s21, %s35
    %p37 = scmp.eq.s32.totalorder %s16, 0
    %p38 = por %p36, %p37
    %s40 = sadd.s32 %s39, 1
    %p43 = scmp.eq.s32.totalorder %s10, 1
    %p44 = scmp.ne.s32.totalorder %s39, %s41
    %p45 = scmp.eq.s32.totalorder %s10, 0
    %p46 = por %p44, %p45
    %p47 = scmp.ne.s32.totalorder %s39, %s41
    %p48 = scmp.eq.s32.totalorder %s15, 1
    %p49 = por %p47, %p48
    %p50 = scmp.ne.s32.totalorder %s41, %s42
    %p51 = scmp.eq.s32.totalorder %s15, 0
    %p52 = por %p50, %p51
    %p53 = scmp.ne.s32.totalorder %s41, %s42
    %p54 = scmp.eq.s32.totalorder %s16, 1
    %p55 = por %p53, %p54
    %p57 = scmp.ne.s32.totalorder %s42, %s56
    %p58 = scmp.eq.s32.totalorder %s16, 0
    %p59 = por %p57, %p58
    %s61 = sadd.s32 %s60, 1
    %p64 = scmp.eq.s32.totalorder %s10, 1
    %p65 = scmp.ne.s32.totalorder %s60, %s62
    %p66 = scmp.eq.s32.totalorder %s10, 0
    %p67 = por %p65, %p66
    %p68 = scmp.ne.s32.totalorder %s60, %s62
    %p69 = scmp.eq.s32.totalorder %s15, 1
    %p70 = por %p68, %p69
    %p71 = scmp.ne.s32.totalorder %s62, %s63
    %p72 = scmp.eq.s32.totalorder %s15, 0
    %p73 = por %p71, %p72
    %p74 = scmp.ne.s32.totalorder %s62, %s63
    %p75 = scmp.eq.s32.totalorder %s16, 1
    %p76 = por %p74, %p75
    %p78 = scmp.ne.s32.totalorder %s63, %s77
    %p79 = scmp.eq.s32.totalorder %s16, 0
    %p80 = por %p78, %p79
    %s81 = ssub.s32 %s10, %s17
    %p82 = scmp.eq.s32.totalorder %s81, 0
    %s84 = sadd.s32 %s83, 1
    %s85 = scalar_select %p82, %s83, %s84
    %p88 = pneg %p82
    %p89 = scmp.eq.s32.totalorder %s10, 1
    %p90 = por %p88, %p89
    %p91 = scmp.ne.s32.totalorder %s83, %s86
    %p92 = scmp.eq.s32.totalorder %s10, 0
    %p93 = por %p91, %p92
    %p94 = scmp.ne.s32.totalorder %s83, %s86
    %p95 = scmp.eq.s32.totalorder %s15, 1
    %p96 = por %p94, %p95
    %p97 = scmp.ne.s32.totalorder %s86, %s87
    %p98 = scmp.eq.s32.totalorder %s15, 0
    %p99 = por %p97, %p98
    %p100 = scmp.ne.s32.totalorder %s86, %s87
    %p101 = scmp.eq.s32.totalorder %s16, 1
    %p102 = por %p100, %p101
    %p104 = scmp.ne.s32.totalorder %s87, %s103
    %p105 = scmp.eq.s32.totalorder %s16, 0
    %p106 = por %p104, %p105
    %s107 = ssub.s32 %s10, %s17
    %p108 = scmp.eq.s32.totalorder %s107, 0
    %s110 = sadd.s32 %s109, 1
    %s111 = scalar_select %p108, %s109, %s110
    %p114 = pneg %p108
    %p115 = scmp.eq.s32.totalorder %s10, 1
    %p116 = por %p114, %p115
    %p117 = scmp.ne.s32.totalorder %s109, %s112
    %p118 = scmp.eq.s32.totalorder %s10, 0
    %p119 = por %p117, %p118
    %p120 = scmp.ne.s32.totalorder %s109, %s112
    %p121 = scmp.eq.s32.totalorder %s15, 1
    %p122 = por %p120, %p121
    %p123 = scmp.ne.s32.totalorder %s112, %s113
    %p124 = scmp.eq.s32.totalorder %s15, 0
    %p125 = por %p123, %p124
    %p126 = scmp.ne.s32.totalorder %s112, %s113
    %p127 = scmp.eq.s32.totalorder %s16, 1
    %p128 = por %p126, %p127
    %p130 = scmp.ne.s32.totalorder %s113, %s129
    %p131 = scmp.eq.s32.totalorder %s16, 0
    %p132 = por %p130, %p131
    %p133 = scmp.le.s32.totalorder 1, %s10
    %p134 = scmp.lt.s32.totalorder %s10, 3
    %p135 = pnand %p133, %p134
    %p136 = pneg %p135
    // Predicated region
    $region9: #{shuffle_unit_forward.1} parent=5 // pred_check
      _
    $region10: #{shuffle_unit_forward.1} parent=5 // pred_check_branch
      %138 = sbr.rel (%p135) target = $region12
    $region11: #{shuffle_unit_forward.1} parent=5 // pred_region
      %s139 = ssub.s32 %s10, 1
      // Predicated region
      $region13: #{shuffle_unit_forward.1} parent=11 // pred_check
        %p140 = pneg %p31
      $region14: #{shuffle_unit_forward.1} parent=11 // pred_check_branch
        %142 = sbr.rel (%p140) target = $region16
      $region15: #{shuffle_unit_forward.1} parent=11 // pred_region
        _
      $region16: #{shuffle_unit_forward.1} parent=11 // pred_fallthru
        _
      // Predicated region
      $region17: #{shuffle_unit_forward.1} parent=11 // pred_check
        %p143 = pneg %p52
      $region18: #{shuffle_unit_forward.1} parent=11 // pred_check_branch
        %145 = sbr.rel (%p143) target = $region20
      $region19: #{shuffle_unit_forward.1} parent=11 // pred_region
        _
      $region20: #{shuffle_unit_forward.1} parent=11 // pred_fallthru
        _
      // Predicated region
      $region21: #{shuffle_unit_forward.1} parent=11 // pred_check
        %p146 = pneg %p73
      $region22: #{shuffle_unit_forward.1} parent=11 // pred_check_branch
        %148 = sbr.rel (%p146) target = $region24
      $region23: #{shuffle_unit_forward.1} parent=11 // pred_region
        _
      $region24: #{shuffle_unit_forward.1} parent=11 // pred_fallthru
        _
    $region12: #{shuffle_unit_forward.1} parent=5 // pred_fallthru
      _
    %p149 = scmp.lt.s32.totalorder %s10, 2
    // Predicated region
    $region25: #{shuffle_unit_forward.1} parent=5 // pred_check
      %p150 = pneg %p149
    $region26: #{shuffle_unit_forward.1} parent=5 // pred_check_branch
      %152 = sbr.rel (%p150) target = $region28
    $region27: #{shuffle_unit_forward.1} parent=5 // pred_region
      // Predicated region
      $region29: #{shuffle_unit_forward.1} parent=27 // pred_check
        %p153 = pneg %p93
      $region30: #{shuffle_unit_forward.1} parent=27 // pred_check_branch
        %155 = sbr.rel (%p153) target = $region32
      $region31: #{shuffle_unit_forward.1} parent=27 // pred_region
        %s156 = smul.u32 2, %s10
        %p157 = scmp.lt.s32.totalorder %s156, 3
        %s158 = scalar_select %p157, %s156, 3
        %s159 = smul.addr %s158, 4
        %s160 = scalar_lea.vmem %s3, %s159
        %s161 = smul.u32 2, %s10
      $region32: #{shuffle_unit_forward.1} parent=27 // pred_fallthru
        _
    $region28: #{shuffle_unit_forward.1} parent=5 // pred_fallthru
      _
    %p162 = scmp.le.s32.totalorder 1, %s10
    %p163 = scmp.lt.s32.totalorder %s10, 3
    %p164 = pnand %p162, %p163
    %p165 = pneg %p164
    // Predicated region
    $region33: #{shuffle_unit_forward.1} parent=5 // pred_check
      _
    $region34: #{shuffle_unit_forward.1} parent=5 // pred_check_branch
      %167 = sbr.rel (%p164) target = $region36
    $region35: #{shuffle_unit_forward.1} parent=5 // pred_region
      %s168 = ssub.s32 %s10, 1
      %p169 = pneg %p31
      %p170 = pneg %p28
      %p171 = pneg %p52
      %p172 = pneg %p49
      %p173 = pneg %p73
      %p174 = pneg %p70
      %s175 = smul.u32 2, %s15
      %p176 = scmp.lt.s32.totalorder %s175, 3
      %s177 = scalar_select %p176, %s175, 3
      %s178 = smul.addr %s177, 4
      %s179 = scalar_lea.vmem %s3, %s178
      %p180 = pneg %p99
      %p181 = pneg %p96
      %p182 = pneg %p125
      %p183 = pneg %p122
      %s184 = smul.u32 2, %s15
      %p185 = scmp.lt.s32.totalorder %s184, 3
      %s186 = scalar_select %p185, %s184, 3
      %s187 = smul.addr %s186, 4
      %s188 = scalar_lea.vmem %s4, %s187
      %s189 = smul.u32 2, %s15
      %p190 = scmp.lt.s32.totalorder %s189, 3
      %s191 = scalar_select %p190, %s189, 3
      %s192 = smul.addr %s191, 4
      %s193 = scalar_lea.vmem %s3, %s192
      %s194 = smul.u32 2, %s15
      %s195 = smul.u32 2, %s15
      %p196 = scmp.lt.s32.totalorder %s195, 3
      %s197 = scalar_select %p196, %s195, 3
      %s198 = smul.addr %s197, 4
      %s199 = scalar_lea.vmem %s4, %s198
      %s200 = smul.u32 2, %s15
      %v201 = vld [vmem:[%s193] sm:$0xff]
      %v202 = vld [vmem:[%s0] sm:$0xf]
      %v203 = vld [vmem:[%s1] sm:$0x3]
      %205 = vset.pattern.permute.xlu0 9
      %206 = vperm.xlu0 %205, %v203
      %v207 = vpop.permute.xlu0 %206
      %210 = vset.pattern.permute.xlu0 0
      %211 = vperm.xlu0 %210, %v202
      %v212 = vpop.permute.xlu0 %211
      %v215 = vlaneseq
      %v216 = vshrl.u32 %v215, 7
      %v217 = vsub.s32 2, %v216
      %v218 = vrot.slane %v201, %v217
      %v219 = vlaneseq
      %v220 = vshrl.u32 %v219, 7
      %v221 = vsub.s32 6, %v220
      %v222 = vrot.slane %v201, %v221
      %v225 = vlaneseq
      %v226 = vshrl.u32 %v225, 7
      %v227 = vsub.s32 2, %v226
      %v228 = vrot.slane %v218, %v227
      %v229 = vlaneseq
      %v230 = vshrl.u32 %v229, 7
      %v231 = vsub.s32 2, %v230
      %v232 = vrot.slane %v222, %v231
      %v233 = vmul.f32 %v212, %v228
      %v234 = vmul.f32 %v212, %v232
      %v235 = vadd.f32 %v207, %v233
      %v236 = vadd.f32 %v207, %v234
      %237 = vset.pattern.permute.xlu0 1
      %238 = vperm.xlu0 %237, %v202
      %v239 = vpop.permute.xlu0 %238
      %v241 = vlaneseq
      %v242 = vshrl.u32 %v241, 7
      %v243 = vsub.s32 3, %v242
      %v244 = vrot.slane %v201, %v243
      %v245 = vlaneseq
      %v246 = vshrl.u32 %v245, 7
      %v247 = vsub.s32 7, %v246
      %v248 = vrot.slane %v201, %v247
      %v251 = vlaneseq
      %v252 = vshrl.u32 %v251, 7
      %v253 = vsub.s32 3, %v252
      %v254 = vrot.slane %v244, %v253
      %v255 = vlaneseq
      %v256 = vshrl.u32 %v255, 7
      %v257 = vsub.s32 3, %v256
      %v258 = vrot.slane %v248, %v257
      %v259 = vmul.f32 %v239, %v254
      %v260 = vmul.f32 %v239, %v258
      %v261 = vadd.f32 %v235, %v259
      %v262 = vadd.f32 %v236, %v260
      %v263 = vmax.f32 %v261, 0.0
      %v264 = vmax.f32 %v262, 0.0
      %265 = vset.pattern.permute.xlu0 10
      %266 = vperm.xlu0 %265, %v203
      %v267 = vpop.permute.xlu0 %266
      %269 = vrot.lane.b32.xlu0 %v263, 17
      %v270 = vpop.permute.xlu0 %269
      %271 = vrot.lane.b32.xlu0 %v264, 17
      %v272 = vpop.permute.xlu0 %271
      %v273 = vlaneseq
      %v274 = vand.u32 %v273, 127
      %vm275 = vcmp.lt.s32.totalorder %v274, 17
      %v276 = vsel %vm275, %v270, %v272
      %v277 = vsel %vm275, %v272, %v270
      %v278 = vld [vmem:[%s2] ss:$8 sm:$0x3]
      %v280 = vlaneseq
      %v281 = vshrl.u32 %v280, 7
      %v282 = vsub.s32 0, %v281
      %v283 = vrot.slane %v278, %v282
      %v284 = vlaneseq
      %v285 = vshrl.u32 %v284, 7
      %v286 = vsub.s32 1, %v285
      %v287 = vrot.slane %v278, %v286
      %v290 = vmul.f32 %v277, %v283
      %v291 = vmul.f32 %v276, %v287
      %292 = vset.pattern.permute.xlu0 0
      %293 = vperm.xlu0 %292, %v203
      %v294 = vpop.permute.xlu0 %293
      %v296 = vmul.f32 %v294, %v290
      %v297 = vmul.f32 %v294, %v291
      %v298 = vadd.f32 %v267, %v296
      %v299 = vadd.f32 %v267, %v297
      %300 = vrot.lane.b32.xlu0 %v263, 16
      %v301 = vpop.permute.xlu0 %300
      %302 = vrot.lane.b32.xlu0 %v264, 16
      %v303 = vpop.permute.xlu0 %302
      %vm304 = vcmp.lt.s32.totalorder %v274, 16
      %v305 = vsel %vm304, %v301, %v303
      %v306 = vsel %vm304, %v303, %v301
      %s307 = scalar_lea.vmem %s2, 1
      %v308 = vld [vmem:[%s307] ss:$8 sm:$0x3]
      %v310 = vlaneseq
      %v311 = vshrl.u32 %v310, 7
      %v312 = vsub.s32 0, %v311
      %v313 = vrot.slane %v308, %v312
      %v314 = vlaneseq
      %v315 = vshrl.u32 %v314, 7
      %v316 = vsub.s32 1, %v315
      %v317 = vrot.slane %v308, %v316
      %v320 = vmul.f32 %v306, %v313
      %v321 = vmul.f32 %v305, %v317
      %322 = vset.pattern.permute.xlu0 1
      %323 = vperm.xlu0 %322, %v203
      %v324 = vpop.permute.xlu0 %323
      %v326 = vmul.f32 %v324, %v320
      %v327 = vmul.f32 %v324, %v321
      %v328 = vadd.f32 %v298, %v326
      %v329 = vadd.f32 %v299, %v327
      %330 = vrot.lane.b32.xlu0 %v263, 15
      %v331 = vpop.permute.xlu0 %330
      %332 = vrot.lane.b32.xlu0 %v264, 15
      %v333 = vpop.permute.xlu0 %332
      %vm334 = vcmp.lt.s32.totalorder %v274, 15
      %v335 = vsel %vm334, %v331, %v333
      %v336 = vsel %vm334, %v333, %v331
      %s337 = scalar_lea.vmem %s2, 2
      %v338 = vld [vmem:[%s337] ss:$8 sm:$0x3]
      %v340 = vlaneseq
      %v341 = vshrl.u32 %v340, 7
      %v342 = vsub.s32 0, %v341
      %v343 = vrot.slane %v338, %v342
      %v344 = vlaneseq
      %v345 = vshrl.u32 %v344, 7
      %v346 = vsub.s32 1, %v345
      %v347 = vrot.slane %v338, %v346
      %v350 = vmul.f32 %v336, %v343
      %v351 = vmul.f32 %v335, %v347
      %352 = vset.pattern.permute.xlu0 2
      %353 = vperm.xlu0 %352, %v203
      %v354 = vpop.permute.xlu0 %353
      %v356 = vmul.f32 %v354, %v350
      %v357 = vmul.f32 %v354, %v351
      %v358 = vadd.f32 %v328, %v356
      %v359 = vadd.f32 %v329, %v357
      %360 = vrot.lane.b32.xlu0 %v263, 1
      %v361 = vpop.permute.xlu0 %360
      %362 = vrot.lane.b32.xlu0 %v264, 1
      %v363 = vpop.permute.xlu0 %362
      %vm364 = vcmp.lt.s32.totalorder %v274, 1
      %v365 = vsel %vm364, %v361, %v363
      %v366 = vsel %vm364, %v363, %v361
      %s367 = scalar_lea.vmem %s2, 3
      %v368 = vld [vmem:[%s367] ss:$8 sm:$0x3]
      %v370 = vlaneseq
      %v371 = vshrl.u32 %v370, 7
      %v372 = vsub.s32 0, %v371
      %v373 = vrot.slane %v368, %v372
      %v374 = vlaneseq
      %v375 = vshrl.u32 %v374, 7
      %v376 = vsub.s32 1, %v375
      %v377 = vrot.slane %v368, %v376
      %v380 = vmul.f32 %v366, %v373
      %v381 = vmul.f32 %v365, %v377
      %382 = vset.pattern.permute.xlu0 3
      %383 = vperm.xlu0 %382, %v203
      %v384 = vpop.permute.xlu0 %383
      %v386 = vmul.f32 %v384, %v380
      %v387 = vmul.f32 %v384, %v381
      %v388 = vadd.f32 %v358, %v386
      %v389 = vadd.f32 %v359, %v387
      %390 = vset.pattern.permute.xlu0 4
      %391 = vperm.xlu0 %390, %v203
      %v392 = vpop.permute.xlu0 %391
      %v394 = vmul.f32 %v392, %v263
      %v395 = vmul.f32 %v392, %v264
      %v396 = vadd.f32 %v388, %v394
      %v397 = vadd.f32 %v389, %v395
      %398 = vrot.lane.b32.xlu0 %v263, 127
      %v399 = vpop.permute.xlu0 %398
      %400 = vrot.lane.b32.xlu0 %v264, 127
      %v401 = vpop.permute.xlu0 %400
      %vm402 = vcmp.lt.s32.totalorder %v274, 127
      %v403 = vsel %vm402, %v399, %v401
      %v404 = vsel %vm402, %v401, %v399
      %s405 = scalar_lea.vmem %s2, 4
      %v406 = vld [vmem:[%s405] ss:$8 sm:$0x3]
      %v408 = vlaneseq
      %v409 = vshrl.u32 %v408, 7
      %v410 = vsub.s32 0, %v409
      %v411 = vrot.slane %v406, %v410
      %v412 = vlaneseq
      %v413 = vshrl.u32 %v412, 7
      %v414 = vsub.s32 1, %v413
      %v415 = vrot.slane %v406, %v414
      %v418 = vmul.f32 %v403, %v411
      %v419 = vmul.f32 %v404, %v415
      %420 = vset.pattern.permute.xlu0 5
      %421 = vperm.xlu0 %420, %v203
      %v422 = vpop.permute.xlu0 %421
      %v424 = vmul.f32 %v422, %v418
      %v425 = vmul.f32 %v422, %v419
      %v426 = vadd.f32 %v396, %v424
      %v427 = vadd.f32 %v397, %v425
      %428 = vrot.lane.b32.xlu0 %v263, 113
      %v429 = vpop.permute.xlu0 %428
      %430 = vrot.lane.b32.xlu0 %v264, 113
      %v431 = vpop.permute.xlu0 %430
      %vm432 = vcmp.lt.s32.totalorder %v274, 113
      %v433 = vsel %vm432, %v429, %v431
      %v434 = vsel %vm432, %v431, %v429
      %s435 = scalar_lea.vmem %s2, 5
      %v436 = vld [vmem:[%s435] ss:$8 sm:$0x3]
      %v438 = vlaneseq
      %v439 = vshrl.u32 %v438, 7
      %v440 = vsub.s32 0, %v439
      %v441 = vrot.slane %v436, %v440
      %v442 = vlaneseq
      %v443 = vshrl.u32 %v442, 7
      %v444 = vsub.s32 1, %v443
      %v445 = vrot.slane %v436, %v444
      %v448 = vmul.f32 %v433, %v441
      %v449 = vmul.f32 %v434, %v445
      %450 = vset.pattern.permute.xlu0 6
      %451 = vperm.xlu0 %450, %v203
      %v452 = vpop.permute.xlu0 %451
      %v454 = vmul.f32 %v452, %v448
      %v455 = vmul.f32 %v452, %v449
      %v456 = vadd.f32 %v426, %v454
      %v457 = vadd.f32 %v427, %v455
      %458 = vrot.lane.b32.xlu0 %v263, 112
      %v459 = vpop.permute.xlu0 %458
      %460 = vrot.lane.b32.xlu0 %v264, 112
      %v461 = vpop.permute.xlu0 %460
      %vm462 = vcmp.lt.s32.totalorder %v274, 112
      %v463 = vsel %vm462, %v459, %v461
      %v464 = vsel %vm462, %v461, %v459
      %s465 = scalar_lea.vmem %s2, 6
      %v466 = vld [vmem:[%s465] ss:$8 sm:$0x3]
      %v468 = vlaneseq
      %v469 = vshrl.u32 %v468, 7
      %v470 = vsub.s32 0, %v469
      %v471 = vrot.slane %v466, %v470
      %v472 = vlaneseq
      %v473 = vshrl.u32 %v472, 7
      %v474 = vsub.s32 1, %v473
      %v475 = vrot.slane %v466, %v474
      %v478 = vmul.f32 %v463, %v471
      %v479 = vmul.f32 %v464, %v475
      %480 = vset.pattern.permute.xlu0 7
      %481 = vperm.xlu0 %480, %v203
      %v482 = vpop.permute.xlu0 %481
      %v484 = vmul.f32 %v482, %v478
      %v485 = vmul.f32 %v482, %v479
      %v486 = vadd.f32 %v456, %v484
      %v487 = vadd.f32 %v457, %v485
      %488 = vrot.lane.b32.xlu0 %v263, 111
      %v489 = vpop.permute.xlu0 %488
      %490 = vrot.lane.b32.xlu0 %v264, 111
      %v491 = vpop.permute.xlu0 %490
      %vm492 = vcmp.lt.s32.totalorder %v274, 111
      %v493 = vsel %vm492, %v489, %v491
      %v494 = vsel %vm492, %v491, %v489
      %s495 = scalar_lea.vmem %s2, 7
      %v496 = vld [vmem:[%s495] ss:$8 sm:$0x3]
      %v498 = vlaneseq
      %v499 = vshrl.u32 %v498, 7
      %v500 = vsub.s32 0, %v499
      %v501 = vrot.slane %v496, %v500
      %v502 = vlaneseq
      %v503 = vshrl.u32 %v502, 7
      %v504 = vsub.s32 1, %v503
      %v505 = vrot.slane %v496, %v504
      %v508 = vmul.f32 %v493, %v501
      %v509 = vmul.f32 %v494, %v505
      %510 = vset.pattern.permute.xlu0 8
      %511 = vperm.xlu0 %510, %v203
      %v512 = vpop.permute.xlu0 %511
      %v514 = vmul.f32 %v512, %v508
      %v515 = vmul.f32 %v512, %v509
      %v516 = vadd.f32 %v486, %v514
      %v517 = vadd.f32 %v487, %v515
      %518 = vset.pattern.permute.xlu0 11
      %519 = vperm.xlu0 %518, %v203
      %v520 = vpop.permute.xlu0 %519
      %v522 = vlaneseq
      %v523 = vshrl.u32 %v522, 7
      %v524 = vsub.s32 0, %v523
      %v525 = vrot.slane %v516, %v524
      %v526 = vlaneseq
      %v527 = vshrl.u32 %v526, 7
      %v528 = vsub.s32 0, %v527
      %v529 = vrot.slane %v517, %v528
      %v530 = vmul.f32 %v212, %v525
      %v531 = vmul.f32 %v212, %v529
      %v534 = vrot.slane %v530, 2
      %v535 = vrot.slane %v531, 2
      %v538 = vadd.f32 %v520, %v534
      %v539 = vadd.f32 %v520, %v535
      %v540 = vlaneseq
      %v541 = vshrl.u32 %v540, 7
      %v542 = vsub.s32 1, %v541
      %v543 = vrot.slane %v516, %v542
      %v544 = vlaneseq
      %v545 = vshrl.u32 %v544, 7
      %v546 = vsub.s32 1, %v545
      %v547 = vrot.slane %v517, %v546
      %v548 = vmul.f32 %v239, %v543
      %v549 = vmul.f32 %v239, %v547
      %v552 = vrot.slane %v548, 2
      %v553 = vrot.slane %v549, 2
      %v556 = vadd.f32 %v538, %v552
      %v557 = vadd.f32 %v539, %v553
      %v558 = vmax.f32 %v556, 0.0
      %v559 = vmax.f32 %v557, 0.0
      %v560 = vcombine.high %v201, %v201
      %v564 = vrot.slane %v558, 6
      %v565 = vrot.slane %v559, 6
      %vm568 = vcmask 1041408
      %v569 = vsel %vm568, %v201, %v564
      %v570 = vsel %vm568, %v560, %v565
      %v573 = vcombine.low %v569, %v570
      %575 = vst [vmem:[%s199] sm:$0xff] %v573
      %s576 = smul.u32 2, %s15
      %p577 = scmp.lt.s32.totalorder %s576, 3
      %s578 = scalar_select %p577, %s576, 3
      %s579 = smul.addr %s578, 4
      %s580 = scalar_lea.vmem %s4, %s579
      // Predicated region
      $region37: #{shuffle_unit_forward.1} parent=35 // pred_check
        %p581 = pneg %p122
      $region38: #{shuffle_unit_forward.1} parent=35 // pred_check_branch
        %583 = sbr.rel (%p581) target = $region40
      $region39: #{shuffle_unit_forward.1} parent=35 // pred_region
        %s584 = smul.u32 2, %s15
      $region40: #{shuffle_unit_forward.1} parent=35 // pred_fallthru
        _
    $region36: #{shuffle_unit_forward.1} parent=5 // pred_fallthru
      _
    %p585 = scmp.le.s32.totalorder 2, %s10
    // Predicated region
    $region41: #{shuffle_unit_forward.1} parent=5 // pred_check
      %p586 = pneg %p585
    $region42: #{shuffle_unit_forward.1} parent=5 // pred_check_branch
      %588 = sbr.rel (%p586) target = $region44
    $region43: #{shuffle_unit_forward.1} parent=5 // pred_region
      %s589 = ssub.s32 %s10, 2
      // Predicated region
      $region45: #{shuffle_unit_forward.1} parent=43 // pred_check
        %p590 = pneg %p128
      $region46: #{shuffle_unit_forward.1} parent=43 // pred_check_branch
        %592 = sbr.rel (%p590) target = $region48
      $region47: #{shuffle_unit_forward.1} parent=43 // pred_region
        %s593 = smul.u32 2, %s16
        %p594 = scmp.lt.s32.totalorder %s593, 3
        %s595 = scalar_select %p594, %s593, 3
        %s596 = smul.addr %s595, 4
        %s597 = scalar_lea.vmem %s4, %s596
      $region48: #{shuffle_unit_forward.1} parent=43 // pred_fallthru
        _
    $region44: #{shuffle_unit_forward.1} parent=5 // pred_fallthru
      _
  $region6: #{shuffle_unit_forward.1} parent=0 // loop_footer
    %s14 = sadd.s32 1, %s10
  $region7: #{shuffle_unit_forward.1} parent=0 // loop_footer_branch
    %9 = sbr.rel target = $region3
  $region8: #{shuffle_unit_forward.1} parent=0 // loop_exit
    _

</llo_original>
